<compile_context>
chip_gen: v6e
topology: v6e:2x2x1
jax: 0.10.0
libtpu: 0.0.40
codegen_flags: <defaults>
</compile_context>

<pallas_src>
import jax
import jax.numpy as jnp
from jax.experimental import pallas as pl
from jax.experimental.pallas import tpu as pltpu


def _round_up(n, m):
    return ((n + m - 1) // m) * m


def _cdiv(a, b):
    return (a + b - 1) // b


def policy_kernel(xT_ref, w1_ref, b1_ref, w2_ref, b2_ref, outT_ref):
    """Batch-in-lanes forward pass for one batch tile.

    xT_ref:   [S, TB]  bf16   (x transposed: batch on the lane axis)
    w1_ref:   [H, S]   bf16   (PyTorch fc1.weight layout)
    b1_ref:   [H, 1]   f32
    w2_ref:   [A, H]   bf16   (PyTorch fc2.weight layout)
    b2_ref:   [A, 1]   f32
    outT_ref: [A, TB]  f32    (probs transposed)
    """
    a_dim = w2_ref.shape[0]

    # fc1 on the MXU: [H, S] @ [S, TB] -> [H, TB], f32 accumulation.
    hT = jnp.dot(w1_ref[...], xT_ref[...], preferred_element_type=jnp.float32)
    hT = jnp.maximum(hT + b1_ref[...], 0.0)           # bias + ReLU on the VPU (f32)

    # fc2 on the MXU: [A, H] @ [H, TB] -> [A, TB], exact K=128 contraction.
    logitsT = jnp.dot(w2_ref[...], hT.astype(jnp.bfloat16),
                      preferred_element_type=jnp.float32) + b2_ref[...]

    if a_dim == 2:
        # 2-way softmax == sigmoid of the logit difference.  One VPU subtract
        # + EUP exp/div per lane, no reductions; rows sum to 1 exactly.
        d = logitsT[1:2, :] - logitsT[0:1, :]
        p1 = 1.0 / (1.0 + jnp.exp(-d))
        outT_ref[0:1, :] = (1.0 - p1).astype(outT_ref.dtype)   # lane-dense stores
        outT_ref[1:2, :] = p1.astype(outT_ref.dtype)
    else:
        # General exact softmax over the (small) sublane axis for A > 2.
        m = jnp.max(logitsT, axis=0, keepdims=True)
        e = jnp.exp(logitsT - m)
        outT_ref[...] = (e / jnp.sum(e, axis=0, keepdims=True)).astype(outT_ref.dtype)


def policy_network_forward(x, w1, b1, w2, b2, *, batch_tile=None, max_tile=8192,
                           min_pallas_batch=128, force_pallas=False):
    """probs = softmax(relu(x @ w1.T + b1) @ w2.T + b2, axis=-1).

    x:  [B, state_dim] f32
    w1: [hidden, state_dim], b1: [hidden]       (PyTorch fc1 layout)
    w2: [action_dim, hidden], b2: [action_dim]  (PyTorch fc2 layout)
    Returns probs [B, action_dim] f32.
    """
    B, S = x.shape
    H = w1.shape[0]
    A = w2.shape[0]

    if B < min_pallas_batch and not force_pallas:
        # Tiny batch: kernel dispatch + DMA latency dwarfs the compute.
        h = jnp.maximum(x @ w1.T + b1, 0.0)
        return jax.nn.softmax(h @ w2.T + b2, axis=-1)

    # ---- tile selection (lane axis = batch) ----
    if batch_tile is None:
        b128 = _round_up(B, 128)
        if b128 <= 1024:
            batch_tile = b128                                   # single grid step
        else:
            # >= 4 grid steps (>= 2 per TensorCore under megacore), capped.
            batch_tile = min(max_tile, _round_up(_cdiv(B, 4), 128))
    num_tiles = _cdiv(B, batch_tile)
    B_pad = num_tiles * batch_tile

    # ---- batch-in-lanes operands; bf16 for the MXU, f32 biases ----
    xT = jnp.transpose(x)
    if B_pad != B:
        xT = jnp.pad(xT, ((0, 0), (0, B_pad - B)))
    xT = xT.astype(jnp.bfloat16)
    w1b = w1.astype(jnp.bfloat16)
    w2b = w2.astype(jnp.bfloat16)
    b1c = b1.reshape(H, 1).astype(jnp.float32)
    b2c = b2.reshape(A, 1).astype(jnp.float32)

    outT = pl.pallas_call(
        policy_kernel,
        out_shape=jax.ShapeDtypeStruct((A, B_pad), jnp.float32),
        grid_spec=pltpu.PrefetchScalarGridSpec(
            num_scalar_prefetch=0,
            grid=(num_tiles,),
            in_specs=[
                pl.BlockSpec((S, batch_tile), lambda i: (0, i)),   # x tile (lane-dense)
                pl.BlockSpec((H, S), lambda i: (0, 0)),            # W1 (resident)
                pl.BlockSpec((H, 1), lambda i: (0, 0)),            # b1
                pl.BlockSpec((A, H), lambda i: (0, 0)),            # W2 (resident)
                pl.BlockSpec((A, 1), lambda i: (0, 0)),            # b2
            ],
            out_specs=pl.BlockSpec((A, batch_tile), lambda i: (0, i)),
        ),
        compiler_params=pltpu.CompilerParams(
            dimension_semantics=("parallel",),
        ),
    )(xT, w1b, b1c, w2b, b2c)

    # Un-transpose (and drop batch padding) in the wrapper.
    return jnp.transpose(outT[:, :B])


def init_params(key, state_dim, action_dim, hidden_size=128):
    """nn.Linear default init; weights in PyTorch's [out, in] layout."""
    k1, k2, k3, k4 = jax.random.split(key, 4)
    lim1 = 1.0 / jnp.sqrt(state_dim)
    lim2 = 1.0 / jnp.sqrt(hidden_size)
    w1 = jax.random.uniform(k1, (hidden_size, state_dim), jnp.float32, -lim1, lim1)
    b1 = jax.random.uniform(k2, (hidden_size,), jnp.float32, -lim1, lim1)
    w2 = jax.random.uniform(k3, (action_dim, hidden_size), jnp.float32, -lim2, lim2)
    b2 = jax.random.uniform(k4, (action_dim,), jnp.float32, -lim2, lim2)
    return w1, b1, w2, b2


def reference_forward(x, w1, b1, w2, b2):
    h = jnp.maximum(x @ w1.T + b1, 0.0)
    return jax.nn.softmax(h @ w2.T + b2, axis=-1)


if __name__ == "__main__":
    state_dim, action_dim, hidden_size = 4, 2, 128

    key = jax.random.PRNGKey(0)
    kx_small, kx_big, kp = jax.random.split(key, 3)
    w1, b1, w2, b2 = init_params(kp, state_dim, action_dim, hidden_size)

    # 1) Tiny batch (B=8): wrapper uses the fused-XLA fallback (exact f32).
    x_small = jax.random.normal(kx_small, (8, state_dim), jnp.float32)
    out_small = jax.block_until_ready(policy_network_forward(x_small, w1, b1, w2, b2))
    ref_small = reference_forward(x_small, w1, b1, w2, b2)
    assert out_small.shape == (8, action_dim)
    assert jnp.allclose(out_small, ref_small, atol=1e-5, rtol=1e-5), "mismatch (small, XLA path)"

    # 2) Same tiny batch forced through the Pallas kernel (batch padded to 128 lanes).
    out_small_k = jax.block_until_ready(
        policy_network_forward(x_small, w1, b1, w2, b2, force_pallas=True))
    assert out_small_k.shape == (8, action_dim)
    # bf16 MXU operands -> ~1e-3-level agreement with the f32 reference.
    assert jnp.allclose(out_small_k, ref_small, atol=5e-3, rtol=5e-3), "mismatch (small, Pallas)"
    assert jnp.allclose(jnp.sum(out_small_k, axis=-1), 1.0, atol=1e-5), "rows must sum to 1"

    # 3) Larger batch (B=2048): 4 "parallel" grid steps of 512 lane-dense columns.
    x_big = jax.random.normal(kx_big, (2048, state_dim), jnp.float32)
    out_big = jax.block_until_ready(policy_network_forward(x_big, w1, b1, w2, b2))
    ref_big = reference_forward(x_big, w1, b1, w2, b2)
    assert out_big.shape == (2048, action_dim)
    assert jnp.allclose(out_big, ref_big, atol=5e-3, rtol=5e-3), "mismatch (large batch)"
    assert jnp.allclose(jnp.sum(out_big, axis=-1), 1.0, atol=1e-5), "rows must sum to 1"

    print("KERNEL_OK")
</pallas_src>

<mosaic_0001>
module attributes {stable_mosaic.version = 11 : i64} {
  func.func @policy_kernel(%arg0: i32, %arg1: memref<4x128xbf16, #tpu.memory_space<vmem>>, %arg2: memref<128x4xbf16, #tpu.memory_space<vmem>>, %arg3: memref<128x1xf32, #tpu.memory_space<vmem>>, %arg4: memref<2x128xbf16, #tpu.memory_space<vmem>>, %arg5: memref<2x1xf32, #tpu.memory_space<vmem>>, %arg6: memref<2x128xf32, #tpu.memory_space<vmem>>) attributes {dimension_semantics = [#tpu.dimension_semantics<parallel>], iteration_bounds = array<i64: 1>, scalar_prefetch = 0 : i64, scratch_operands = 0 : i64, tpu.core_type = #tpu.core_type<tc>, window_params = [{transform_indices = @transform_0, window_bounds = array<i64: 4, 128>}, {pipeline_mode = #tpu.pipeline_mode<synchronous>, transform_indices = @transform_1, window_bounds = array<i64: 128, 4>}, {pipeline_mode = #tpu.pipeline_mode<synchronous>, transform_indices = @transform_2, window_bounds = array<i64: 128, 1>}, {pipeline_mode = #tpu.pipeline_mode<synchronous>, transform_indices = @transform_3, window_bounds = array<i64: 2, 128>}, {pipeline_mode = #tpu.pipeline_mode<synchronous>, transform_indices = @transform_4, window_bounds = array<i64: 2, 1>}, {transform_indices = @transform_5, window_bounds = array<i64: 2, 128>}]} {
    %c0 = arith.constant 0 : index
    %c0_0 = arith.constant 0 : index
    %0 = vector.load %arg2[%c0, %c0_0] : memref<128x4xbf16, #tpu.memory_space<vmem>>, vector<128x4xbf16>
    %c0_1 = arith.constant 0 : index
    %c0_2 = arith.constant 0 : index
    %1 = vector.load %arg1[%c0_1, %c0_2] : memref<4x128xbf16, #tpu.memory_space<vmem>>, vector<4x128xbf16>
    %cst = arith.constant dense<0.000000e+00> : vector<128x128xf32>
    %2 = tpu.matmul %0, %1, %cst {dimension_numbers = #tpu.dot_dimension_numbers<[1], [0], [0], [1], [0, 0, 1, 1], [], []>} : vector<128x4xbf16>, vector<4x128xbf16>, vector<128x128xf32> -> vector<128x128xf32>
    %c0_3 = arith.constant 0 : index
    %c0_4 = arith.constant 0 : index
    %3 = vector.load %arg3[%c0_3, %c0_4] : memref<128x1xf32, #tpu.memory_space<vmem>>, vector<128x1xf32>
    %4 = vector.broadcast %3 : vector<128x1xf32> to vector<128x128xf32>
    %5 = arith.addf %2, %4 : vector<128x128xf32>
    %cst_5 = arith.constant 0.000000e+00 : f32
    %6 = vector.broadcast %cst_5 : f32 to vector<128x128xf32>
    %7 = arith.maximumf %5, %6 : vector<128x128xf32>
    %c0_6 = arith.constant 0 : index
    %c0_7 = arith.constant 0 : index
    %8 = vector.load %arg4[%c0_6, %c0_7] : memref<2x128xbf16, #tpu.memory_space<vmem>>, vector<2x128xbf16>
    %9 = arith.truncf %7 : vector<128x128xf32> to vector<128x128xbf16>
    %cst_8 = arith.constant dense<0.000000e+00> : vector<2x128xf32>
    %10 = tpu.matmul %8, %9, %cst_8 {dimension_numbers = #tpu.dot_dimension_numbers<[1], [0], [0], [1], [0, 0, 1, 1], [], []>} : vector<2x128xbf16>, vector<128x128xbf16>, vector<2x128xf32> -> vector<2x128xf32>
    %c0_9 = arith.constant 0 : index
    %c0_10 = arith.constant 0 : index
    %11 = vector.load %arg5[%c0_9, %c0_10] : memref<2x1xf32, #tpu.memory_space<vmem>>, vector<2x1xf32>
    %12 = vector.broadcast %11 : vector<2x1xf32> to vector<2x128xf32>
    %13 = arith.addf %10, %12 : vector<2x128xf32>
    %14 = vector.extract_strided_slice %13 {offsets = [1, 0], sizes = [1, 128], strides = [1, 1]} : vector<2x128xf32> to vector<1x128xf32>
    %15 = vector.extract_strided_slice %13 {offsets = [0, 0], sizes = [1, 128], strides = [1, 1]} : vector<2x128xf32> to vector<1x128xf32>
    %16 = arith.subf %14, %15 : vector<1x128xf32>
    %cst_11 = arith.constant 0.000000e+00 : f32
    %17 = vector.broadcast %cst_11 : f32 to vector<1x128xf32>
    %18 = arith.subf %17, %16 : vector<1x128xf32>
    %19 = math.exp %18 : vector<1x128xf32>
    %cst_12 = arith.constant 1.000000e+00 : f32
    %20 = vector.broadcast %cst_12 : f32 to vector<1x128xf32>
    %21 = arith.addf %20, %19 : vector<1x128xf32>
    %cst_13 = arith.constant 1.000000e+00 : f32
    %22 = vector.broadcast %cst_13 : f32 to vector<1x128xf32>
    %23 = arith.divf %22, %21 : vector<1x128xf32>
    %cst_14 = arith.constant 1.000000e+00 : f32
    %24 = vector.broadcast %cst_14 : f32 to vector<1x128xf32>
    %25 = arith.subf %24, %23 : vector<1x128xf32>
    %c0_15 = arith.constant 0 : index
    %c0_16 = arith.constant 0 : index
    %26 = vector.load %arg6[%c0_15, %c0_16] : memref<2x128xf32, #tpu.memory_space<vmem>>, vector<1x128xf32>
    tpu.vector_store %arg6[%c0_15, %c0_16], %25 {strides = array<i32>} : memref<2x128xf32, #tpu.memory_space<vmem>>, vector<1x128xf32>,
    %c1 = arith.constant 1 : index
    %c0_17 = arith.constant 0 : index
    %27 = vector.load %arg6[%c1, %c0_17] : memref<2x128xf32, #tpu.memory_space<vmem>>, vector<1x128xf32>
    tpu.vector_store %arg6[%c1, %c0_17], %23 {strides = array<i32>} : memref<2x128xf32, #tpu.memory_space<vmem>>, vector<1x128xf32>,
    return
  }
  func.func @transform_0(%arg0: i32) -> (i32, i32) {
    %c0_i32 = arith.constant 0 : i32
    %c0_i32_0 = arith.constant 0 : i32
    return %c0_i32, %arg0 : i32, i32
  }
  func.func @transform_1(%arg0: i32) -> (i32, i32) {
    %c0_i32 = arith.constant 0 : i32
    %c0_i32_0 = arith.constant 0 : i32
    %c0_i32_1 = arith.constant 0 : i32
    return %c0_i32, %c0_i32_0 : i32, i32
  }
  func.func @transform_2(%arg0: i32) -> (i32, i32) {
    %c0_i32 = arith.constant 0 : i32
    %c0_i32_0 = arith.constant 0 : i32
    %c0_i32_1 = arith.constant 0 : i32
    return %c0_i32, %c0_i32_0 : i32, i32
  }
  func.func @transform_3(%arg0: i32) -> (i32, i32) {
    %c0_i32 = arith.constant 0 : i32
    %c0_i32_0 = arith.constant 0 : i32
    %c0_i32_1 = arith.constant 0 : i32
    return %c0_i32, %c0_i32_0 : i32, i32
  }
  func.func @transform_4(%arg0: i32) -> (i32, i32) {
    %c0_i32 = arith.constant 0 : i32
    %c0_i32_0 = arith.constant 0 : i32
    %c0_i32_1 = arith.constant 0 : i32
    return %c0_i32, %c0_i32_0 : i32, i32
  }
  func.func @transform_5(%arg0: i32) -> (i32, i32) {
    %c0_i32 = arith.constant 0 : i32
    %c0_i32_0 = arith.constant 0 : i32
    return %c0_i32, %arg0 : i32, i32
  }
}

</mosaic_0001>

<llo_original>
// kernel: tpu_custom_call.1
$region0: #{tpu_custom_call.1}
  #allocation0 [shape = 'u32[]', space=smem, size = 0x4, offset = 0x4, fixed_abs, tag = 'smem constant byte address 0x4 - core index']
  #allocation1 [shape = 'u32[144,128]{1,0:T(1,128)}', space=vmem, size = 0x12000, scoped, tag = 'internal scratch']
  %s0 = inlined_call_operand.vmem [shape: bf16[4,128], index: 0, kind: input, shape index: {}]
  %s1 = inlined_call_operand.vmem [shape: bf16[128,4], index: 1, kind: input, shape index: {}]
  %s2 = inlined_call_operand.vmem [shape: f32[128,1], index: 2, kind: input, shape index: {}]
  %s3 = inlined_call_operand.vmem [shape: bf16[2,128], index: 3, kind: input, shape index: {}]
  %s4 = inlined_call_operand.vmem [shape: f32[2,1], index: 4, kind: input, shape index: {}]
  %s5 = inlined_call_operand.hbm [shape: f32[2,128], index: 5, kind: output, shape index: {}]
  %s6 = sld [smem:[#allocation0]]
  $region30: #{tpu_custom_call.1} parent=0
    _
  %s8 = ssub.s32 1, %s6
  %s9 = scalar_select 0, %s8, %s6
  $region1: #{tpu_custom_call.1} parent=0
    #allocation2 [shape = 'u8[1024]{0}', space=vmem, size = 0x400, scoped, tag = 'output window, operand 0, single buffered']
    #allocation3 [shape = 's32[1]{0}', space=sflag, size = 0x4, scoped, tag = 'scoped memory for tpu_custom_call.1']
    %10 = vsyncpa [#allocation3], 0
    // Predicated region
    $region2: #{tpu_custom_call.1} parent=1 // pred_check
      _
    $region3: #{tpu_custom_call.1} parent=1 // pred_check_branch
      %12 = sbr.rel (0) target = $region5
    $region4: #{tpu_custom_call.1} parent=1 // pred_region
      _
    $region5: #{tpu_custom_call.1} parent=1 // pred_fallthru
      _
    // Predicated region
    $region6: #{tpu_custom_call.1} parent=1 // pred_check
      _
    $region7: #{tpu_custom_call.1} parent=1 // pred_check_branch
      %14 = sbr.rel (0) target = $region9
    $region8: #{tpu_custom_call.1} parent=1 // pred_region
      _
    $region9: #{tpu_custom_call.1} parent=1 // pred_fallthru
      _
    // Predicated region
    $region10: #{tpu_custom_call.1} parent=1 // pred_check
      _
    $region11: #{tpu_custom_call.1} parent=1 // pred_check_branch
      %16 = sbr.rel (0) target = $region13
    $region12: #{tpu_custom_call.1} parent=1 // pred_region
      _
    $region13: #{tpu_custom_call.1} parent=1 // pred_fallthru
      _
    // Predicated region
    $region14: #{tpu_custom_call.1} parent=1 // pred_check
      _
    $region15: #{tpu_custom_call.1} parent=1 // pred_check_branch
      %18 = sbr.rel (0) target = $region17
    $region16: #{tpu_custom_call.1} parent=1 // pred_region
      _
    $region17: #{tpu_custom_call.1} parent=1 // pred_fallthru
      _
    // Predicated region
    $region18: #{tpu_custom_call.1} parent=1 // pred_check
      _
    $region19: #{tpu_custom_call.1} parent=1 // pred_check_branch
      %20 = sbr.rel (0) target = $region21
    $region20: #{tpu_custom_call.1} parent=1 // pred_region
      _
    $region21: #{tpu_custom_call.1} parent=1 // pred_fallthru
      _
    %v22 = vld [vmem:[%s1] sm:$0xf]
    %v23 = vld [vmem:[%s1 + $0x4] sm:$0xf]
    %v24 = vld [vmem:[%s1 + $0x8] sm:$0xf]
    %v25 = vld [vmem:[%s1 + $0xc] sm:$0xf]
    %v26 = vld [vmem:[%s1 + $0x10] sm:$0xf]
    %v27 = vld [vmem:[%s1 + $0x14] sm:$0xf]
    %v28 = vld [vmem:[%s1 + $0x18] sm:$0xf]
    %v29 = vld [vmem:[%s1 + $0x1c] sm:$0xf]
    %v30 = vld [vmem:[%s1 + $0x20] sm:$0xf]
    %v31 = vld [vmem:[%s1 + $0x24] sm:$0xf]
    %v32 = vld [vmem:[%s1 + $0x28] sm:$0xf]
    %v33 = vld [vmem:[%s1 + $0x2c] sm:$0xf]
    %v34 = vld [vmem:[%s1 + $0x30] sm:$0xf]
    %v35 = vld [vmem:[%s1 + $0x34] sm:$0xf]
    %v36 = vld [vmem:[%s1 + $0x38] sm:$0xf]
    %v37 = vld [vmem:[%s1 + $0x3c] sm:$0xf]
    %v38 = vld [vmem:[%s0] sm:$0x3]
    %v39 = vld [vmem:[%s2] sm:$0xff]
    %v40 = vld [vmem:[%s2 + $0x8] sm:$0xff]
    %v41 = vld [vmem:[%s2 + $0x10] sm:$0xff]
    %v42 = vld [vmem:[%s2 + $0x18] sm:$0xff]
    %v43 = vld [vmem:[%s2 + $0x20] sm:$0xff]
    %v44 = vld [vmem:[%s2 + $0x28] sm:$0xff]
    %v45 = vld [vmem:[%s2 + $0x30] sm:$0xff]
    %v46 = vld [vmem:[%s2 + $0x38] sm:$0xff]
    %v47 = vld [vmem:[%s2 + $0x40] sm:$0xff]
    %v48 = vld [vmem:[%s2 + $0x48] sm:$0xff]
    %v49 = vld [vmem:[%s2 + $0x50] sm:$0xff]
    %v50 = vld [vmem:[%s2 + $0x58] sm:$0xff]
    %v51 = vld [vmem:[%s2 + $0x60] sm:$0xff]
    %v52 = vld [vmem:[%s2 + $0x68] sm:$0xff]
    %v53 = vld [vmem:[%s2 + $0x70] sm:$0xff]
    %v54 = vld [vmem:[%s2 + $0x78] sm:$0xff]
    %56 = vset.pattern.permute.xlu0 0
    %57 = vperm.xlu0 %56, %v39
    %v58 = vpop.permute.xlu0 %57
    %61 = vset.pattern.permute.xlu0 0
    %62 = vperm.xlu0 %61, %v40
    %v63 = vpop.permute.xlu0 %62
    %66 = vset.pattern.permute.xlu0 0
    %67 = vperm.xlu0 %66, %v41
    %v68 = vpop.permute.xlu0 %67
    %71 = vset.pattern.permute.xlu0 0
    %72 = vperm.xlu0 %71, %v42
    %v73 = vpop.permute.xlu0 %72
    %76 = vset.pattern.permute.xlu0 0
    %77 = vperm.xlu0 %76, %v43
    %v78 = vpop.permute.xlu0 %77
    %81 = vset.pattern.permute.xlu0 0
    %82 = vperm.xlu0 %81, %v44
    %v83 = vpop.permute.xlu0 %82
    %86 = vset.pattern.permute.xlu0 0
    %87 = vperm.xlu0 %86, %v45
    %v88 = vpop.permute.xlu0 %87
    %91 = vset.pattern.permute.xlu0 0
    %92 = vperm.xlu0 %91, %v46
    %v93 = vpop.permute.xlu0 %92
    %96 = vset.pattern.permute.xlu0 0
    %97 = vperm.xlu0 %96, %v47
    %v98 = vpop.permute.xlu0 %97
    %101 = vset.pattern.permute.xlu0 0
    %102 = vperm.xlu0 %101, %v48
    %v103 = vpop.permute.xlu0 %102
    %106 = vset.pattern.permute.xlu0 0
    %107 = vperm.xlu0 %106, %v49
    %v108 = vpop.permute.xlu0 %107
    %111 = vset.pattern.permute.xlu0 0
    %112 = vperm.xlu0 %111, %v50
    %v113 = vpop.permute.xlu0 %112
    %116 = vset.pattern.permute.xlu0 0
    %117 = vperm.xlu0 %116, %v51
    %v118 = vpop.permute.xlu0 %117
    %121 = vset.pattern.permute.xlu0 0
    %122 = vperm.xlu0 %121, %v52
    %v123 = vpop.permute.xlu0 %122
    %126 = vset.pattern.permute.xlu0 0
    %127 = vperm.xlu0 %126, %v53
    %v128 = vpop.permute.xlu0 %127
    %131 = vset.pattern.permute.xlu0 0
    %132 = vperm.xlu0 %131, %v54
    %v133 = vpop.permute.xlu0 %132
    %v151 = vunpack.c.l.b16 %v22
    %v152 = vunpack.c.l.b16 %v23
    %v153 = vunpack.c.l.b16 %v24
    %v154 = vunpack.c.l.b16 %v25
    %v155 = vunpack.c.l.b16 %v26
    %v156 = vunpack.c.l.b16 %v27
    %v157 = vunpack.c.l.b16 %v28
    %v158 = vunpack.c.l.b16 %v29
    %v159 = vunpack.c.l.b16 %v30
    %v160 = vunpack.c.l.b16 %v31
    %v161 = vunpack.c.l.b16 %v32
    %v162 = vunpack.c.l.b16 %v33
    %v163 = vunpack.c.l.b16 %v34
    %v164 = vunpack.c.l.b16 %v35
    %v165 = vunpack.c.l.b16 %v36
    %v166 = vunpack.c.l.b16 %v37
    %v167 = vpack.c.b16 %v152, %v151
    %v168 = vpack.c.b16 %v154, %v153
    %v169 = vpack.c.b16 %v156, %v155
    %v170 = vpack.c.b16 %v158, %v157
    %v171 = vpack.c.b16 %v160, %v159
    %v172 = vpack.c.b16 %v162, %v161
    %v173 = vpack.c.b16 %v164, %v163
    %v174 = vpack.c.b16 %v166, %v165
    %vm175 = vcmask 31744
    %v177 = vsel %vm175, %v167, 0
    %v180 = vsel %vm175, %v168, 0
    %v183 = vsel %vm175, %v169, 0
    %v186 = vsel %vm175, %v170, 0
    %v189 = vsel %vm175, %v171, 0
    %v192 = vsel %vm175, %v172, 0
    %v195 = vsel %vm175, %v173, 0
    %v198 = vsel %vm175, %v174, 0
    %vm200 = vcmask 1041408
    %v202 = vsel %vm200, %v38, 0
    %204 = vmatprep.subr.bf16.mxu0 0
    %205 = vmatpush1.bf16.msra.mxu0 0
    %206 = vmatprep.subr.bf16.mxu0 0
    %207 = vmatpush1.bf16.msra.mxu0 0
    %208 = vmatprep.subr.bf16.mxu0 0
    %209 = vmatpush1.bf16.msra.mxu0 0
    %210 = vmatprep.subr.bf16.mxu0 0
    %211 = vmatpush1.bf16.msra.mxu0 0
    %212 = vmatprep.subr.bf16.mxu0 0
    %213 = vmatpush1.bf16.msra.mxu0 0
    %214 = vmatprep.subr.bf16.mxu0 0
    %215 = vmatpush1.bf16.msra.mxu0 0
    %216 = vmatprep.subr.bf16.mxu0 0
    %217 = vmatpush1.bf16.msra.mxu0 0
    %218 = vmatprep.subr.bf16.mxu0 0
    %219 = vmatpush1.bf16.msra.mxu0 %v202
    %220 = vmatprep.subr.bf16.mxu0 0
    %221 = vmatpush2.bf16.msra.mxu0 0
    %222 = vmatprep.subr.bf16.mxu0 0
    %223 = vmatpush2.bf16.msra.mxu0 0
    %224 = vmatprep.subr.bf16.mxu0 0
    %225 = vmatpush2.bf16.msra.mxu0 0
    %226 = vmatprep.subr.bf16.mxu0 0
    %227 = vmatpush2.bf16.msra.mxu0 0
    %228 = vmatprep.subr.bf16.mxu0 0
    %229 = vmatpush2.bf16.msra.mxu0 0
    %230 = vmatprep.subr.bf16.mxu0 0
    %231 = vmatpush2.bf16.msra.mxu0 0
    %232 = vmatprep.subr.bf16.mxu0 0
    %233 = vmatpush2.bf16.msra.mxu0 0
    %234 = vmatprep.subr.bf16.mxu0 0
    %235 = vmatpush2.bf16.msra.mxu0 0
    %236 = vmatprep.mubr.bf16.mxu0 0
    %237 = vmatmul.mubr.bf16.gmra.mxu0 %v177
    %v238 = vpop.f32.mrf.mxu0
    %v239 = vadd.f32 %v58, %v238
    %v240 = vpop.f32.mrf.mxu0
    %v241 = vpop.f32.mrf.mxu0
    %v242 = vadd.f32 %v63, %v241
    %v243 = vpop.f32.mrf.mxu0
    %244 = vmatprep.mubr.bf16.mxu0 0
    %245 = vmatmul.mubr.bf16.gmra.mxu0 %v180
    %v246 = vpop.f32.mrf.mxu0
    %v247 = vadd.f32 %v68, %v246
    %v248 = vpop.f32.mrf.mxu0
    %v249 = vpop.f32.mrf.mxu0
    %v250 = vadd.f32 %v73, %v249
    %v251 = vpop.f32.mrf.mxu0
    %252 = vmatprep.mubr.bf16.mxu0 0
    %253 = vmatmul.mubr.bf16.gmra.mxu0 %v183
    %v254 = vpop.f32.mrf.mxu0
    %v255 = vadd.f32 %v78, %v254
    %v256 = vpop.f32.mrf.mxu0
    %v257 = vpop.f32.mrf.mxu0
    %v258 = vadd.f32 %v83, %v257
    %v259 = vpop.f32.mrf.mxu0
    %260 = vmatprep.mubr.bf16.mxu0 0
    %261 = vmatmul.mubr.bf16.gmra.mxu0 %v186
    %v262 = vpop.f32.mrf.mxu0
    %v263 = vadd.f32 %v88, %v262
    %v264 = vpop.f32.mrf.mxu0
    %v265 = vpop.f32.mrf.mxu0
    %v266 = vadd.f32 %v93, %v265
    %v267 = vpop.f32.mrf.mxu0
    %268 = vmatprep.mubr.bf16.mxu0 0
    %269 = vmatmul.mubr.bf16.gmra.mxu0 %v189
    %v270 = vpop.f32.mrf.mxu0
    %v271 = vadd.f32 %v98, %v270
    %v272 = vpop.f32.mrf.mxu0
    %v273 = vpop.f32.mrf.mxu0
    %v274 = vadd.f32 %v103, %v273
    %v275 = vpop.f32.mrf.mxu0
    %276 = vmatprep.mubr.bf16.mxu0 0
    %277 = vmatmul.mubr.bf16.gmra.mxu0 %v192
    %v278 = vpop.f32.mrf.mxu0
    %v279 = vadd.f32 %v108, %v278
    %v280 = vpop.f32.mrf.mxu0
    %v281 = vpop.f32.mrf.mxu0
    %v282 = vadd.f32 %v113, %v281
    %v283 = vpop.f32.mrf.mxu0
    %284 = vmatprep.mubr.bf16.mxu0 0
    %285 = vmatmul.mubr.bf16.gmra.mxu0 %v195
    %v286 = vpop.f32.mrf.mxu0
    %v287 = vadd.f32 %v118, %v286
    %v288 = vpop.f32.mrf.mxu0
    %v289 = vpop.f32.mrf.mxu0
    %v290 = vadd.f32 %v123, %v289
    %v291 = vpop.f32.mrf.mxu0
    %292 = vmatprep.mubr.bf16.mxu0 0
    %293 = vmatmul.mubr.bf16.gmra.mxu0 %v198
    %v294 = vpop.f32.mrf.mxu0
    %v295 = vadd.f32 %v128, %v294
    %v296 = vpop.f32.mrf.mxu0
    %v297 = vpop.f32.mrf.mxu0
    %v298 = vadd.f32 %v133, %v297
    %v299 = vpop.f32.mrf.mxu0
    %300 = vdwg.mxu0
    %v301 = vmax.f32 %v239, 0.0
    %v302 = vmax.f32 %v242, 0.0
    %v303 = vmax.f32 %v247, 0.0
    %v304 = vmax.f32 %v250, 0.0
    %v305 = vmax.f32 %v255, 0.0
    %v306 = vmax.f32 %v258, 0.0
    %v307 = vmax.f32 %v263, 0.0
    %v308 = vmax.f32 %v266, 0.0
    %v309 = vmax.f32 %v271, 0.0
    %v310 = vmax.f32 %v274, 0.0
    %v311 = vmax.f32 %v279, 0.0
    %v312 = vmax.f32 %v282, 0.0
    %v313 = vmax.f32 %v287, 0.0
    %v314 = vmax.f32 %v290, 0.0
    %v315 = vmax.f32 %v295, 0.0
    %v316 = vmax.f32 %v298, 0.0
    %v317 = vld [vmem:[%s3] sm:$0x1]
    %v318 = vpack.c.bf16 %v302, %v301
    %v319 = vpack.c.bf16 %v304, %v303
    %v320 = vpack.c.bf16 %v306, %v305
    %v321 = vpack.c.bf16 %v308, %v307
    %v322 = vpack.c.bf16 %v310, %v309
    %v323 = vpack.c.bf16 %v312, %v311
    %v324 = vpack.c.bf16 %v314, %v313
    %v325 = vpack.c.bf16 %v316, %v315
    %v326 = vld [vmem:[%s4] sm:$0x3]
    %328 = vset.pattern.permute.xlu0 0
    %329 = vperm.xlu0 %328, %v326
    %v330 = vpop.permute.xlu0 %329
    %332 = vmatprep.subr.bf16.mxu0 0
    %333 = vmatpush1.bf16.msra.mxu0 %v325
    %334 = vmatprep.subr.bf16.mxu0 0
    %335 = vmatpush1.bf16.msra.mxu0 %v324
    %336 = vmatprep.subr.bf16.mxu0 0
    %337 = vmatpush1.bf16.msra.mxu0 %v323
    %338 = vmatprep.subr.bf16.mxu0 0
    %339 = vmatpush1.bf16.msra.mxu0 %v322
    %340 = vmatprep.subr.bf16.mxu0 0
    %341 = vmatpush1.bf16.msra.mxu0 %v321
    %342 = vmatprep.subr.bf16.mxu0 0
    %343 = vmatpush1.bf16.msra.mxu0 %v320
    %344 = vmatprep.subr.bf16.mxu0 0
    %345 = vmatpush1.bf16.msra.mxu0 %v319
    %346 = vmatprep.subr.bf16.mxu0 0
    %347 = vmatpush1.bf16.msra.mxu0 %v318
    %348 = vmatprep.subr.bf16.mxu0 0
    %349 = vmatpush2.bf16.msra.mxu0 0
    %350 = vmatprep.subr.bf16.mxu0 0
    %351 = vmatpush2.bf16.msra.mxu0 0
    %352 = vmatprep.subr.bf16.mxu0 0
    %353 = vmatpush2.bf16.msra.mxu0 0
    %354 = vmatprep.subr.bf16.mxu0 0
    %355 = vmatpush2.bf16.msra.mxu0 0
    %356 = vmatprep.subr.bf16.mxu0 0
    %357 = vmatpush2.bf16.msra.mxu0 0
    %358 = vmatprep.subr.bf16.mxu0 0
    %359 = vmatpush2.bf16.msra.mxu0 0
    %360 = vmatprep.subr.bf16.mxu0 0
    %361 = vmatpush2.bf16.msra.mxu0 0
    %362 = vmatprep.subr.bf16.mxu0 0
    %363 = vmatpush2.bf16.msra.mxu0 0
    %364 = vmatprep.mubr.bf16.mxu0 0
    %365 = vmatmul.mubr.bf16.gmra.mxu0 %v317
    %v366 = vpop.f32.mrf.mxu0
    %v367 = vadd.f32 %v330, %v366
    %v368 = vpop.f32.mrf.mxu0
    %v369 = vpop.f32.mrf.mxu0
    %v370 = vpop.f32.mrf.mxu0
    %371 = vdwg.mxu0
    %v373 = vrot.slane %v367, 7
    %v375 = vsub.f32 %v367, %v373
    %v376 = vsub.f32 0.0, %v375
    %v377 = vmul.f32 %v376, 1.442695
    %v378 = vpow.pop %v377
    %v379 = vadd.f32 %v378, 1.0
    %v380 = vrcp.pop %v379
    %v381 = vmul.f32 1.0, %v380
    %v382 = vsub.f32 1.0, %v381
    %383 = vst [vmem:[#allocation2 - $0x1] sm:$0x2] %v382
    %384 = vst [vmem:[#allocation2] sm:$0x2] %v381
    // Predicated region
    $region22: #{tpu_custom_call.1} parent=1 // pred_check
      _
    $region23: #{tpu_custom_call.1} parent=1 // pred_check_branch
      %386 = sbr.rel (0) target = $region25
    $region24: #{tpu_custom_call.1} parent=1 // pred_region
      %s388 = ssub.s32 32, 32
      %389 = vsyncadd [#allocation3], %s388
      %s391 = sshll.u32 [#allocation2], 4
      %s392 = int_to_ptr.vmem [resolvable:$true] %s391
      %394 = dma.vmem_to_hbm [thread:$0]  %s392, 32, %s5, [#allocation3]
    $region25: #{tpu_custom_call.1} parent=1 // pred_fallthru
      _
    // Predicated region
    $region26: #{tpu_custom_call.1} parent=1 // pred_check
      _
    $region27: #{tpu_custom_call.1} parent=1 // pred_check_branch
      %396 = sbr.rel (0) target = $region29
    $region28: #{tpu_custom_call.1} parent=1 // pred_region
      %397 = dma.done [#allocation3], 32
    $region29: #{tpu_custom_call.1} parent=1 // pred_fallthru
      _
    %398 = vsyncpa [#allocation3], 1

</llo_original>
